<compile_context>
chip_gen: v7x
topology: tpu7x:2x2x1
jax: 0.10.0
libtpu: 0.0.40
codegen_flags: <defaults>
</compile_context>

<pallas_src>
import functools

import jax
import jax.numpy as jnp
from jax import lax
from jax.experimental import pallas as pl
from jax.experimental.pallas import tpu as pltpu


_LANES = 128
_ACC_ROWS = 64                        # fixed f32 accumulator: (64,128) = 32 KiB
_MAX_BLOCK_BYTES = 4 << 20            # per-input-buffer target (v6e/v7x sweet spot)
_VMEM_BUDGET_BYTES = 12 << 20         # 2x input bufs + f32 temp < v5e 16 MiB scoped
_MIN_KERNEL_BYTES = 2 << 20           # below this, XLA's fused reduce wins


def _default_nsplit() -> int:
    """2-way split feeds both TensorCores on megacore-style chips (v4/v5p/v7x).

    On single-TC chips (v5e / v6e) the split only adds a phantom duplicate
    block fetch and forces the masked path, so drop it there.  Detection is
    best-effort and perf-only; either value is correct.
    """
    try:
        kind = jax.devices()[0].device_kind.lower()
    except Exception:
        return 2
    if "lite" in kind or "v5e" in kind or "v6e" in kind:
        return 1
    return 2


def _sum_kernel(x_ref, o_ref, acc_ref, *, block_rows, n_rows,
                blocks_per_split, n_blocks, needs_mask):
    s = pl.program_id(0)                 # split index     ("parallel")
    i = pl.program_id(1)                 # block in split  ("arbitrary")

    @pl.when(i == 0)
    def _init():
        acc_ref[...] = jnp.zeros_like(acc_ref)

    # Intended (unclamped) global block index.  The DMA index_map clamps to
    # the last real block, but masking is driven by the intended index, so
    # any duplicated / out-of-range fetch contributes exactly zero.
    blk = s * blocks_per_split + i

    def _accumulate(tile_f32):
        # (block_rows,128) -> (block_rows/64, 64, 128); folding the leading
        # axis is pure elementwise vreg adds (VPU only, no XLU).
        acc_ref[...] += tile_f32.reshape(-1, _ACC_ROWS, _LANES).sum(axis=0)

    if needs_mask:
        # Loads are branch-local so the f32 tile never crosses an scf.if
        # boundary (avoids a full-tile VMEM temp + extra vst/vld per step).
        @pl.when(blk < n_blocks - 1)
        def _full_block():
            _accumulate(x_ref[...].astype(jnp.float32))

        @pl.when(blk >= n_blocks - 1)
        def _ragged_or_phantom_block():
            x = x_ref[...].astype(jnp.float32)
            row0 = blk * block_rows
            rows = row0 + lax.broadcasted_iota(jnp.int32, (block_rows, 1), 0)
            # Keep the select (NOT multiply-by-mask): padded rows may hold
            # NaN/Inf garbage which must not propagate.
            _accumulate(jnp.where(rows < n_rows, x, 0.0))
    else:
        _accumulate(x_ref[...].astype(jnp.float32))

    @pl.when(i == pl.num_programs(1) - 1)
    def _finalize():
        # 64 -> 8 rows: elementwise adds of 8 vreg slabs.
        o_ref[...] = acc_ref[...].reshape(_ACC_ROWS // 8, 8, _LANES).sum(axis=0)


def _pallas_partial_sums(x2d, n_rows, block_rows, nsplit):
    """Sums a (n_rows, 128) array; returns (nsplit*8, 128) f32 partial sums."""
    n_blocks = pl.cdiv(n_rows, block_rows)
    blocks_per_split = pl.cdiv(n_blocks, nsplit)
    needs_mask = (n_blocks * block_rows != n_rows) or (
        nsplit * blocks_per_split != n_blocks)

    kernel = functools.partial(
        _sum_kernel,
        block_rows=block_rows,
        n_rows=n_rows,
        blocks_per_split=blocks_per_split,
        n_blocks=n_blocks,
        needs_mask=needs_mask,
    )

    def in_index_map(s, i):
        # Clamp so the DMA never starts past the array end; the kernel masks
        # by the intended index, so clamped fetches add exactly zero.
        return (jnp.minimum(s * blocks_per_split + i, n_blocks - 1), 0)

    return pl.pallas_call(
        kernel,
        out_shape=jax.ShapeDtypeStruct((nsplit * 8, _LANES), jnp.float32),
        grid=(nsplit, blocks_per_split),
        in_specs=[pl.BlockSpec((block_rows, _LANES), in_index_map)],
        out_specs=pl.BlockSpec((8, _LANES), lambda s, i: (s, 0)),
        scratch_shapes=[pltpu.VMEM((_ACC_ROWS, _LANES), jnp.float32)],
        compiler_params=pltpu.CompilerParams(
            dimension_semantics=("parallel", "arbitrary")),
    )(x2d)


def valid_rate_loss(self_informations: jax.Array, *,
                    min_kernel_bytes: int = _MIN_KERNEL_BYTES) -> jax.Array:
    """Returns rate in bpp: global mean of `self_informations`."""
    x = self_informations
    n = int(x.size)
    out_dtype = x.dtype if jnp.issubdtype(x.dtype, jnp.floating) else jnp.float32
    inv_n = 1.0 / float(n)               # exact double reciprocal, one f32 round

    def _fallback():
        total = jnp.sum(x.reshape(-1), dtype=jnp.float32)
        return (total * inv_n).astype(out_dtype)

    itemsize = jnp.dtype(x.dtype).itemsize
    n_rows, rem = divmod(n, _LANES)

    # Fallbacks: tiny inputs (launch + pipeline overhead dominates) and
    # numel % 128 != 0 (avoids an extra full-array copy of the bulk; XLA's
    # fused reduce is the same single HBM pass the kernel would be).
    # TODO(synk): a ragged-tail kernel path (manual DMA of the remainder)
    # would let the Pallas kernel also cover numel % 128 != 0.
    if rem != 0 or n * itemsize < min_kernel_bytes or n_rows < _ACC_ROWS:
        return _fallback()

    main2d = x.reshape(n_rows, _LANES)    # free (bitcast) reshape

    # Footprint-based block sizing: 2 double-buffered input blocks (native
    # dtype) + a worst-case full-tile f32 temp must fit under v5e's 16 MiB
    # scoped-VMEM default; also cap each input block at ~4 MiB (v6e/v7x).
    bytes_per_row_in = _LANES * itemsize
    block_rows = min(
        _MAX_BLOCK_BYTES // bytes_per_row_in,
        _VMEM_BUDGET_BYTES // (2 * bytes_per_row_in + 4 * _LANES))
    block_rows = max(_ACC_ROWS, (block_rows // _ACC_ROWS) * _ACC_ROWS)
    block_rows = min(block_rows, (n_rows // _ACC_ROWS) * _ACC_ROWS)

    nsplit = _default_nsplit()
    partials = _pallas_partial_sums(main2d, n_rows, block_rows, nsplit)

    total = jnp.sum(partials, dtype=jnp.float32)
    return (total * inv_n).astype(out_dtype)


if __name__ == "__main__":
    key = jax.random.PRNGKey(0)

    # Module-consistent small NCHW self-information map (takes the fused-XLA
    # fallback path by design — too small for a kernel launch to pay off).
    x_small = jax.random.uniform(key, (2, 4, 16, 16), dtype=jnp.float32) * 8.0
    bpp_small = valid_rate_loss(x_small)
    jax.block_until_ready(bpp_small)
    ref_small = jnp.mean(x_small)
    assert jnp.allclose(bpp_small, ref_small, rtol=1e-5, atol=1e-5), (
        bpp_small, ref_small)

    # Slightly larger map that exercises the Pallas reduction kernel itself
    # (threshold overridden so the demo stays small).
    x_kernel = jax.random.uniform(key, (2, 4, 32, 32), dtype=jnp.float32) * 8.0
    bpp_kernel = valid_rate_loss(x_kernel, min_kernel_bytes=0)
    jax.block_until_ready(bpp_kernel)
    ref_kernel = jnp.mean(x_kernel)
    assert jnp.allclose(bpp_kernel, ref_kernel, rtol=1e-5, atol=1e-5), (
        bpp_kernel, ref_kernel)

    print("KERNEL_OK")
</pallas_src>

<mosaic_0001>
module attributes {stable_mosaic.version = 11 : i64} {
  func.func @_sum_kernel(%arg0: i32, %arg1: i32, %arg2: memref<64x128xf32, #tpu.memory_space<vmem>>, %arg3: memref<8x128xf32, #tpu.memory_space<vmem>>, %arg4: memref<64x128xf32, #tpu.memory_space<vmem>>) attributes {dimension_semantics = [#tpu.dimension_semantics<parallel>, #tpu.dimension_semantics<arbitrary>], iteration_bounds = array<i64: 2, 1>, scalar_prefetch = 0 : i64, scratch_operands = 1 : i64, tpu.core_type = #tpu.core_type<tc>, window_params = [{transform_indices = @transform_0, window_bounds = array<i64: 64, 128>}, {transform_indices = @transform_1, window_bounds = array<i64: 8, 128>}]} {
    %c0_i32 = arith.constant 0 : i32
    %0 = arith.cmpi eq, %arg1, %c0_i32 : i32
    %1 = arith.extui %0 : i1 to i32
    %c0_i32_0 = arith.constant 0 : i32
    %2 = arith.cmpi ne, %1, %c0_i32_0 : i32
    scf.if %2 {
      %cst = arith.constant 0.000000e+00 : f32
      %14 = vector.broadcast %cst : f32 to vector<64x128xf32>
      %c0 = arith.constant 0 : index
      %c0_7 = arith.constant 0 : index
      %15 = vector.load %arg4[%c0, %c0_7] : memref<64x128xf32, #tpu.memory_space<vmem>>, vector<64x128xf32>
      tpu.vector_store %arg4[%c0, %c0_7], %14 {strides = array<i32>} : memref<64x128xf32, #tpu.memory_space<vmem>>, vector<64x128xf32>,
    } else {
    }
    %c1_i32 = arith.constant 1 : i32
    %3 = arith.muli %arg0, %c1_i32 : i32
    %4 = arith.addi %3, %arg1 : i32
    %c0_i32_1 = arith.constant 0 : i32
    %5 = arith.cmpi slt, %4, %c0_i32_1 : i32
    %6 = arith.extui %5 : i1 to i32
    %c0_i32_2 = arith.constant 0 : i32
    %7 = arith.cmpi ne, %6, %c0_i32_2 : i32
    scf.if %7 {
      %c0 = arith.constant 0 : index
      %c0_7 = arith.constant 0 : index
      %14 = vector.load %arg2[%c0, %c0_7] : memref<64x128xf32, #tpu.memory_space<vmem>>, vector<64x128xf32>
      %c0_8 = arith.constant 0 : index
      %c0_9 = arith.constant 0 : index
      %15 = vector.load %arg4[%c0_8, %c0_9] : memref<64x128xf32, #tpu.memory_space<vmem>>, vector<64x128xf32>
      %16 = vector.shape_cast %14 : vector<64x128xf32> to vector<1x64x128xf32>
      %cst = arith.constant dense<0.000000e+00> : vector<64x128xf32>
      %17 = vector.multi_reduction <add>, %16, %cst [0] : vector<1x64x128xf32> to vector<64x128xf32>
      %18 = arith.addf %15, %17 : vector<64x128xf32>
      %c0_10 = arith.constant 0 : index
      %c0_11 = arith.constant 0 : index
      %19 = vector.load %arg4[%c0_10, %c0_11] : memref<64x128xf32, #tpu.memory_space<vmem>>, vector<64x128xf32>
      tpu.vector_store %arg4[%c0_10, %c0_11], %18 {strides = array<i32>} : memref<64x128xf32, #tpu.memory_space<vmem>>, vector<64x128xf32>,
    } else {
    }
    %c0_i32_3 = arith.constant 0 : i32
    %8 = arith.cmpi sge, %4, %c0_i32_3 : i32
    %9 = arith.extui %8 : i1 to i32
    %c0_i32_4 = arith.constant 0 : i32
    %10 = arith.cmpi ne, %9, %c0_i32_4 : i32
    scf.if %10 {
      %c0 = arith.constant 0 : index
      %c0_7 = arith.constant 0 : index
      %14 = vector.load %arg2[%c0, %c0_7] : memref<64x128xf32, #tpu.memory_space<vmem>>, vector<64x128xf32>
      %c64_i32 = arith.constant 64 : i32
      %15 = arith.muli %4, %c64_i32 : i32
      %16 = tpu.iota {dimensions = array<i32: 0>} : vector<64x1xi32>
      %17 = vector.broadcast %15 : i32 to vector<64x1xi32>
      %18 = arith.addi %17, %16 : vector<64x1xi32>
      %c64_i32_8 = arith.constant 64 : i32
      %19 = vector.broadcast %c64_i32_8 : i32 to vector<64x1xi32>
      %20 = arith.cmpi slt, %18, %19 : vector<64x1xi32>
      %cst = arith.constant 0.000000e+00 : f32
      %21 = vector.shape_cast %20 : vector<64x1xi1> to vector<64x1xi1>
      %22 = vector.broadcast %21 : vector<64x1xi1> to vector<64x128xi1>
      %23 = vector.broadcast %cst : f32 to vector<64x128xf32>
      %24 = arith.select %22, %14, %23 : vector<64x128xi1>, vector<64x128xf32>
      %c0_9 = arith.constant 0 : index
      %c0_10 = arith.constant 0 : index
      %25 = vector.load %arg4[%c0_9, %c0_10] : memref<64x128xf32, #tpu.memory_space<vmem>>, vector<64x128xf32>
      %26 = vector.shape_cast %24 : vector<64x128xf32> to vector<1x64x128xf32>
      %cst_11 = arith.constant dense<0.000000e+00> : vector<64x128xf32>
      %27 = vector.multi_reduction <add>, %26, %cst_11 [0] : vector<1x64x128xf32> to vector<64x128xf32>
      %28 = arith.addf %25, %27 : vector<64x128xf32>
      %c0_12 = arith.constant 0 : index
      %c0_13 = arith.constant 0 : index
      %29 = vector.load %arg4[%c0_12, %c0_13] : memref<64x128xf32, #tpu.memory_space<vmem>>, vector<64x128xf32>
      tpu.vector_store %arg4[%c0_12, %c0_13], %28 {strides = array<i32>} : memref<64x128xf32, #tpu.memory_space<vmem>>, vector<64x128xf32>,
    } else {
    }
    %c0_i32_5 = arith.constant 0 : i32
    %11 = arith.cmpi eq, %arg1, %c0_i32_5 : i32
    %12 = arith.extui %11 : i1 to i32
    %c0_i32_6 = arith.constant 0 : i32
    %13 = arith.cmpi ne, %12, %c0_i32_6 : i32
    scf.if %13 {
      %c0 = arith.constant 0 : index
      %c0_7 = arith.constant 0 : index
      %14 = vector.load %arg4[%c0, %c0_7] : memref<64x128xf32, #tpu.memory_space<vmem>>, vector<64x128xf32>
      %15 = vector.shape_cast %14 : vector<64x128xf32> to vector<8x8x128xf32>
      %cst = arith.constant dense<0.000000e+00> : vector<8x128xf32>
      %16 = vector.multi_reduction <add>, %15, %cst [0] : vector<8x8x128xf32> to vector<8x128xf32>
      %c0_8 = arith.constant 0 : index
      %c0_9 = arith.constant 0 : index
      %17 = vector.load %arg3[%c0_8, %c0_9] : memref<8x128xf32, #tpu.memory_space<vmem>>, vector<8x128xf32>
      tpu.vector_store %arg3[%c0_8, %c0_9], %16 {strides = array<i32>} : memref<8x128xf32, #tpu.memory_space<vmem>>, vector<8x128xf32>,
    } else {
    }
    return
  }
  func.func @transform_0(%arg0: i32, %arg1: i32) -> (i32, i32) {
    %c1_i32 = arith.constant 1 : i32
    %0 = arith.muli %arg0, %c1_i32 : i32
    %1 = arith.addi %0, %arg1 : i32
    %c0_i32 = arith.constant 0 : i32
    %2 = arith.minsi %1, %c0_i32 : i32
    %c0_i32_0 = arith.constant 0 : i32
    %c0_i32_1 = arith.constant 0 : i32
    return %2, %c0_i32_0 : i32, i32
  }
  func.func @transform_1(%arg0: i32, %arg1: i32) -> (i32, i32) {
    %c0_i32 = arith.constant 0 : i32
    %c0_i32_0 = arith.constant 0 : i32
    return %arg0, %c0_i32 : i32, i32
  }
}

</mosaic_0001>

<llo_original>
// kernel: tpu_custom_call.1
$region0: #{tpu_custom_call.1}
  #allocation0 [shape = 'u32[]', space=smem, size = 0x4, offset = 0x4, fixed_abs, tag = 'smem constant byte address 0x4 - core index']
  #allocation1 [shape = 'u32[144,128]{1,0:T(1,128)}', space=vmem, size = 0x12000, scoped, tag = 'internal scratch']
  #allocation2 [shape = 'f32[64,128]{1,0:T(8,128)}', space=vmem, size = 0x8000, scoped, tag = 'scratch operand']
  %s0 = inlined_call_operand.hbm [shape: f32[64,128], index: 0, kind: input, shape index: {}]
  %s1 = inlined_call_operand.hbm [shape: f32[16,128], index: 1, kind: output, shape index: {}]
  %s2 = sld [smem:[#allocation0]]
  $region57: #{tpu_custom_call.1} parent=0
    _
  %s4 = ssub.s32 1, %s2
  %s5 = scalar_select 0, %s4, %s2
  $region1: #{tpu_custom_call.1} parent=0
    #allocation3 [shape = 'u8[65536]{0}', space=vmem, size = 0x10000, scoped, tag = 'input window, operand 0']
    #allocation4 [shape = 's32[2]{0}', space=sflag, size = 0x8, scoped, tag = 'scoped memory for tpu_custom_call.1']
    #allocation5 [shape = 's32[2]{0}', space=sflag, size = 0x8, scoped, tag = 'scoped memory for tpu_custom_call.1']
    #allocation6 [shape = 'u8[8192]{0}', space=vmem, size = 0x2000, scoped, tag = 'output window, operand 0']
    %6 = vsyncpa [#allocation4], 0
    %s7 = scalar_lea.sflag [#allocation4], 1
    %8 = vsyncpa %s7, 0
    %9 = vsyncpa [#allocation5], 0
    %s10 = scalar_lea.sflag [#allocation5], 1
    %11 = vsyncpa %s10, 0
    loop: start=0, step=1, limit=4
    $region2: #{tpu_custom_call.1} parent=1 // loop_pre_header
      _
    $region3: #{tpu_custom_call.1} parent=1 // loop_header
      %s13 = sphi 0, %s17
      %p14 = scmp.ge.s32.totalorder %s13, 4
      %s20 = sphi 0, %s32
      %s21 = sphi 0, %s28
      %s22 = sphi 0, %s20
      %s23 = sphi 0, %s21
      %s24 = sphi 0, %s22
      %s25 = sphi 0, %s23
      %s41 = sphi 0, %s43
      %s44 = sphi 0, %s41
      %s45 = sphi 0, %s44
      %s61 = sphi 0, %s45
      %s67 = sphi 0, %s69
      %s70 = sphi 0, %s67
      %s71 = sphi 0, %s70
      %s87 = sphi 0, %s71
    $region4: #{tpu_custom_call.1} parent=1 // loop_header_branch
      %16 = sbr.rel (%p14) target = $region8
    $region5: #{tpu_custom_call.1} parent=1 // loop_body
      %s18 = ssub.s32 %s13, 1
      %s19 = ssub.s32 %s13, 2
      %s26 = sadd.s32 1, %s21
      %p27 = scmp.ge.s32.totalorder %s26, 1
      %s28 = scalar_select %p27, 0, %s26
      %s29 = sadd.s32 1, %s20
      %s30 = scalar_select %p27, %s29, %s20
      %p31 = scmp.ge.s32.totalorder %s30, 2
      %s32 = scalar_select %p31, 0, %s30
      %s33 = sadd.s32 %s20, %s21
      %p34 = scmp.lt.s32.totalorder %s33, 0
      %s35 = scalar_select %p34, %s33, 0
      %s36 = sadd.s32 %s32, %s28
      %p37 = scmp.lt.s32.totalorder %s36, 0
      %s38 = scalar_select %p37, %s36, 0
      %s39 = ssub.s32 %s35, %s38
      %p40 = scmp.eq.s32.totalorder %s39, 0
      %s42 = sadd.s32 %s41, 1
      %s43 = scalar_select %p40, %s41, %s42
      %p46 = pneg %p40
      %p47 = scmp.eq.s32.totalorder %s13, 1
      %p48 = por %p46, %p47
      %p49 = scmp.ne.s32.totalorder %s41, %s44
      %p50 = scmp.eq.s32.totalorder %s13, 0
      %p51 = por %p49, %p50
      %p52 = scmp.ne.s32.totalorder %s41, %s44
      %p53 = scmp.eq.s32.totalorder %s18, 1
      %p54 = por %p52, %p53
      %p55 = scmp.ne.s32.totalorder %s44, %s45
      %p56 = scmp.eq.s32.totalorder %s18, 0
      %p57 = por %p55, %p56
      %p58 = scmp.ne.s32.totalorder %s44, %s45
      %p59 = scmp.eq.s32.totalorder %s19, 1
      %p60 = por %p58, %p59
      %p62 = scmp.ne.s32.totalorder %s45, %s61
      %p63 = scmp.eq.s32.totalorder %s19, 0
      %p64 = por %p62, %p63
      %s65 = ssub.s32 %s20, %s32
      %p66 = scmp.eq.s32.totalorder %s65, 0
      %s68 = sadd.s32 %s67, 1
      %s69 = scalar_select %p66, %s67, %s68
      %p72 = pneg %p66
      %p73 = scmp.eq.s32.totalorder %s13, 1
      %p74 = por %p72, %p73
      %p75 = scmp.ne.s32.totalorder %s67, %s70
      %p76 = scmp.eq.s32.totalorder %s13, 0
      %p77 = por %p75, %p76
      %p78 = scmp.ne.s32.totalorder %s67, %s70
      %p79 = scmp.eq.s32.totalorder %s18, 1
      %p80 = por %p78, %p79
      %p81 = scmp.ne.s32.totalorder %s70, %s71
      %p82 = scmp.eq.s32.totalorder %s18, 0
      %p83 = por %p81, %p82
      %p84 = scmp.ne.s32.totalorder %s70, %s71
      %p85 = scmp.eq.s32.totalorder %s19, 1
      %p86 = por %p84, %p85
      %p88 = scmp.ne.s32.totalorder %s71, %s87
      %p89 = scmp.eq.s32.totalorder %s19, 0
      %p90 = por %p88, %p89
      %p91 = scmp.le.s32.totalorder 1, %s13
      %p92 = scmp.lt.s32.totalorder %s13, 3
      %p93 = pnand %p91, %p92
      %p94 = pneg %p93
      // Predicated region
      $region9: #{tpu_custom_call.1} parent=5 // pred_check
        _
      $region10: #{tpu_custom_call.1} parent=5 // pred_check_branch
        %96 = sbr.rel (%p93) target = $region12
      $region11: #{tpu_custom_call.1} parent=5 // pred_region
        %s97 = ssub.s32 %s13, 1
      $region12: #{tpu_custom_call.1} parent=5 // pred_fallthru
        _
      %p98 = scmp.lt.s32.totalorder %s13, 2
      // Predicated region
      $region13: #{tpu_custom_call.1} parent=5 // pred_check
        %p99 = pneg %p98
      $region14: #{tpu_custom_call.1} parent=5 // pred_check_branch
        %101 = sbr.rel (%p99) target = $region16
      $region15: #{tpu_custom_call.1} parent=5 // pred_region
        // Predicated region
        $region17: #{tpu_custom_call.1} parent=15 // pred_check
          %p102 = pneg %p51
        $region18: #{tpu_custom_call.1} parent=15 // pred_check_branch
          %104 = sbr.rel (%p102) target = $region20
        $region19: #{tpu_custom_call.1} parent=15 // pred_region
          %s105 = sand.u32 %s41, 1
          %s106 = scalar_lea.sflag [#allocation4], %s105
          %s107 = sand.u32 %s41, 1
          %s108 = smul.addr %s107, 64
          %s109 = scalar_lea.vmem [#allocation3], %s108
          %s110 = sadd.s32 %s20, %s21
          %p111 = scmp.lt.s32.totalorder %s110, 0
          %s112 = scalar_select %p111, %s110, 0
          %s113 = smul.u32 8, %s112
          %s115 = ssub.s32 1024, 1024
          %116 = vsyncadd %s106, %s115
          %s117 = smul.addr %s113, 128
          %s118 = scalar_lea.hbm %s0, %s117
          %s119 = sshll.u32 %s109, 4
          %s120 = int_to_ptr.vmem [resolvable:$true] %s119
          %125 = dma.hbm_to_vmem [thread:$0]  %s118, 1024, %s120, %s106, 128, 128, 8
        $region20: #{tpu_custom_call.1} parent=15 // pred_fallthru
          _
      $region16: #{tpu_custom_call.1} parent=5 // pred_fallthru
        _
      %p126 = scmp.le.s32.totalorder 1, %s13
      %p127 = scmp.lt.s32.totalorder %s13, 3
      %p128 = pnand %p126, %p127
      %p129 = pneg %p128
      // Predicated region
      $region21: #{tpu_custom_call.1} parent=5 // pred_check
        _
      $region22: #{tpu_custom_call.1} parent=5 // pred_check_branch
        %131 = sbr.rel (%p128) target = $region24
      $region23: #{tpu_custom_call.1} parent=5 // pred_region
        %s132 = ssub.s32 %s13, 1
        %s133 = sand.u32 %s44, 1
        %s134 = scalar_lea.sflag [#allocation4], %s133
        %s135 = sand.u32 %s44, 1
        %s136 = smul.addr %s135, 64
        %s137 = scalar_lea.vmem [#allocation3], %s136
        // Predicated region
        $region25: #{tpu_custom_call.1} parent=23 // pred_check
          %p138 = pneg %p57
        $region26: #{tpu_custom_call.1} parent=23 // pred_check_branch
          %140 = sbr.rel (%p138) target = $region28
        $region27: #{tpu_custom_call.1} parent=23 // pred_region
          %141 = dma.done %s134, 1024
        $region28: #{tpu_custom_call.1} parent=23 // pred_fallthru
          _
        %s142 = sand.u32 %s44, 1
        %s143 = scalar_lea.sflag [#allocation4], %s142
        %s144 = sand.u32 %s44, 1
        %s145 = smul.addr %s144, 64
        %s146 = scalar_lea.vmem [#allocation3], %s145
        %p147 = pneg %p57
        %p148 = pneg %p54
        %p149 = pneg %p83
        %p150 = pneg %p80
        %s151 = sand.u32 %s70, 1
        %s152 = scalar_lea.sflag [#allocation5], %s151
        %s153 = sand.u32 %s70, 1
        %s154 = smul.addr %s153, 8
        %s155 = scalar_lea.vmem [#allocation6], %s154
        %s156 = sadd.s32 %s22, %s23
        %p157 = scmp.lt.s32.totalorder %s156, 0
        %s158 = scalar_select %p157, %s156, 0
        %s159 = smul.u32 8, %s158
        %p160 = scmp.eq.s32.totalorder %s23, 0
        // Predicated region
        $region29: #{tpu_custom_call.1} parent=23 // pred_check
          %p161 = pneg %p160
        $region30: #{tpu_custom_call.1} parent=23 // pred_check_branch
          %163 = sbr.rel (%p161) target = $region32
        $region31: #{tpu_custom_call.1} parent=23 // pred_region
          %164 = vst [vmem:[#allocation2] sm:$0xff] 0.0
          %165 = vst [vmem:[#allocation2 + $0x8] sm:$0xff] 0.0
          %166 = vst [vmem:[#allocation2 + $0x10] sm:$0xff] 0.0
          %167 = vst [vmem:[#allocation2 + $0x18] sm:$0xff] 0.0
          %168 = vst [vmem:[#allocation2 + $0x20] sm:$0xff] 0.0
          %169 = vst [vmem:[#allocation2 + $0x28] sm:$0xff] 0.0
          %170 = vst [vmem:[#allocation2 + $0x30] sm:$0xff] 0.0
          %171 = vst [vmem:[#allocation2 + $0x38] sm:$0xff] 0.0
        $region32: #{tpu_custom_call.1} parent=23 // pred_fallthru
          _
        %s172 = sadd.s32 %s22, %s23
        %p173 = scmp.lt.s32.totalorder %s172, 0
        // Predicated region
        $region33: #{tpu_custom_call.1} parent=23 // pred_check
          %p174 = pneg %p173
        $region34: #{tpu_custom_call.1} parent=23 // pred_check_branch
          %176 = sbr.rel (%p174) target = $region36
        $region35: #{tpu_custom_call.1} parent=23 // pred_region
          %v177 = vld [vmem:[%s137] sm:$0xff]
          %v178 = vld [vmem:[%s137 + $0x8] sm:$0xff]
          %v179 = vld [vmem:[%s137 + $0x10] sm:$0xff]
          %v180 = vld [vmem:[%s137 + $0x18] sm:$0xff]
          %v181 = vld [vmem:[%s137 + $0x20] sm:$0xff]
          %v182 = vld [vmem:[%s137 + $0x28] sm:$0xff]
          %v183 = vld [vmem:[%s137 + $0x30] sm:$0xff]
          %v184 = vld [vmem:[%s137 + $0x38] sm:$0xff]
          %v185 = vld [vmem:[#allocation2] sm:$0xff]
          %v186 = vld [vmem:[#allocation2 + $0x8] sm:$0xff]
          %v187 = vld [vmem:[#allocation2 + $0x10] sm:$0xff]
          %v188 = vld [vmem:[#allocation2 + $0x18] sm:$0xff]
          %v189 = vld [vmem:[#allocation2 + $0x20] sm:$0xff]
          %v190 = vld [vmem:[#allocation2 + $0x28] sm:$0xff]
          %v191 = vld [vmem:[#allocation2 + $0x30] sm:$0xff]
          %v192 = vld [vmem:[#allocation2 + $0x38] sm:$0xff]
          %v193 = vadd.f32 %v177, 0.0
          %v194 = vadd.f32 %v178, 0.0
          %v195 = vadd.f32 %v179, 0.0
          %v196 = vadd.f32 %v180, 0.0
          %v197 = vadd.f32 %v181, 0.0
          %v198 = vadd.f32 %v182, 0.0
          %v199 = vadd.f32 %v183, 0.0
          %v200 = vadd.f32 %v184, 0.0
          %v201 = vadd.f32 %v185, %v193
          %v202 = vadd.f32 %v186, %v194
          %v203 = vadd.f32 %v187, %v195
          %v204 = vadd.f32 %v188, %v196
          %v205 = vadd.f32 %v189, %v197
          %v206 = vadd.f32 %v190, %v198
          %v207 = vadd.f32 %v191, %v199
          %v208 = vadd.f32 %v192, %v200
          %209 = vst [vmem:[#allocation2] sm:$0xff] %v201
          %210 = vst [vmem:[#allocation2 + $0x8] sm:$0xff] %v202
          %211 = vst [vmem:[#allocation2 + $0x10] sm:$0xff] %v203
          %212 = vst [vmem:[#allocation2 + $0x18] sm:$0xff] %v204
          %213 = vst [vmem:[#allocation2 + $0x20] sm:$0xff] %v205
          %214 = vst [vmem:[#allocation2 + $0x28] sm:$0xff] %v206
          %215 = vst [vmem:[#allocation2 + $0x30] sm:$0xff] %v207
          %216 = vst [vmem:[#allocation2 + $0x38] sm:$0xff] %v208
        $region36: #{tpu_custom_call.1} parent=23 // pred_fallthru
          _
        %p217 = scmp.ge.s32.totalorder %s172, 0
        // Predicated region
        $region37: #{tpu_custom_call.1} parent=23 // pred_check
          %p218 = pneg %p217
        $region38: #{tpu_custom_call.1} parent=23 // pred_check_branch
          %220 = sbr.rel (%p218) target = $region40
        $region39: #{tpu_custom_call.1} parent=23 // pred_region
          %v221 = vld [vmem:[%s137] sm:$0xff]
          %v222 = vld [vmem:[%s137 + $0x8] sm:$0xff]
          %v223 = vld [vmem:[%s137 + $0x10] sm:$0xff]
          %v224 = vld [vmem:[%s137 + $0x18] sm:$0xff]
          %v225 = vld [vmem:[%s137 + $0x20] sm:$0xff]
          %v226 = vld [vmem:[%s137 + $0x28] sm:$0xff]
          %v227 = vld [vmem:[%s137 + $0x30] sm:$0xff]
          %v228 = vld [vmem:[%s137 + $0x38] sm:$0xff]
          %s229 = smul.u32 %s172, 64
          %v230 = vlaneseq
          %v231 = vshrl.u32 %v230, 7
          %v232 = vadd.s32 %v231, 8
          %v233 = vadd.s32 %v231, 16
          %v234 = vadd.s32 %v231, 24
          %v235 = vadd.s32 %v231, 32
          %v236 = vadd.s32 %v231, 40
          %v237 = vadd.s32 %v231, 48
          %v238 = vadd.s32 %v231, 56
          %v239 = vstv %s229
          %v240 = vadd.s32 %v239, %v231
          %v241 = vadd.s32 %v239, %v232
          %v242 = vadd.s32 %v239, %v233
          %v243 = vadd.s32 %v239, %v234
          %v244 = vadd.s32 %v239, %v235
          %v245 = vadd.s32 %v239, %v236
          %v246 = vadd.s32 %v239, %v237
          %v247 = vadd.s32 %v239, %v238
          %vm248 = vcmp.lt.s32.totalorder %v240, 64
          %vm249 = vcmp.lt.s32.totalorder %v241, 64
          %vm250 = vcmp.lt.s32.totalorder %v242, 64
          %vm251 = vcmp.lt.s32.totalorder %v243, 64
          %vm252 = vcmp.lt.s32.totalorder %v244, 64
          %vm253 = vcmp.lt.s32.totalorder %v245, 64
          %vm254 = vcmp.lt.s32.totalorder %v246, 64
          %vm255 = vcmp.lt.s32.totalorder %v247, 64
          %v256 = vsel %vm248, 1, 0
          %v257 = vsel %vm249, 1, 0
          %v258 = vsel %vm250, 1, 0
          %v259 = vsel %vm251, 1, 0
          %v260 = vsel %vm252, 1, 0
          %v261 = vsel %vm253, 1, 0
          %v262 = vsel %vm254, 1, 0
          %v263 = vsel %vm255, 1, 0
          %vm264 = vcmp.eq.s32.totalorder %v256, 1
          %vm265 = vcmp.eq.s32.totalorder %v257, 1
          %vm266 = vcmp.eq.s32.totalorder %v258, 1
          %vm267 = vcmp.eq.s32.totalorder %v259, 1
          %vm268 = vcmp.eq.s32.totalorder %v260, 1
          %vm269 = vcmp.eq.s32.totalorder %v261, 1
          %vm270 = vcmp.eq.s32.totalorder %v262, 1
          %vm271 = vcmp.eq.s32.totalorder %v263, 1
          %v272 = vsel %vm264, %v221, 0.0
          %v273 = vsel %vm265, %v222, 0.0
          %v274 = vsel %vm266, %v223, 0.0
          %v275 = vsel %vm267, %v224, 0.0
          %v276 = vsel %vm268, %v225, 0.0
          %v277 = vsel %vm269, %v226, 0.0
          %v278 = vsel %vm270, %v227, 0.0
          %v279 = vsel %vm271, %v228, 0.0
          %v280 = vld [vmem:[#allocation2] sm:$0xff]
          %v281 = vld [vmem:[#allocation2 + $0x8] sm:$0xff]
          %v282 = vld [vmem:[#allocation2 + $0x10] sm:$0xff]
          %v283 = vld [vmem:[#allocation2 + $0x18] sm:$0xff]
          %v284 = vld [vmem:[#allocation2 + $0x20] sm:$0xff]
          %v285 = vld [vmem:[#allocation2 + $0x28] sm:$0xff]
          %v286 = vld [vmem:[#allocation2 + $0x30] sm:$0xff]
          %v287 = vld [vmem:[#allocation2 + $0x38] sm:$0xff]
          %v288 = vadd.f32 %v272, 0.0
          %v289 = vadd.f32 %v273, 0.0
          %v290 = vadd.f32 %v274, 0.0
          %v291 = vadd.f32 %v275, 0.0
          %v292 = vadd.f32 %v276, 0.0
          %v293 = vadd.f32 %v277, 0.0
          %v294 = vadd.f32 %v278, 0.0
          %v295 = vadd.f32 %v279, 0.0
          %v296 = vadd.f32 %v280, %v288
          %v297 = vadd.f32 %v281, %v289
          %v298 = vadd.f32 %v282, %v290
          %v299 = vadd.f32 %v283, %v291
          %v300 = vadd.f32 %v284, %v292
          %v301 = vadd.f32 %v285, %v293
          %v302 = vadd.f32 %v286, %v294
          %v303 = vadd.f32 %v287, %v295
          %304 = vst [vmem:[#allocation2] sm:$0xff] %v296
          %305 = vst [vmem:[#allocation2 + $0x8] sm:$0xff] %v297
          %306 = vst [vmem:[#allocation2 + $0x10] sm:$0xff] %v298
          %307 = vst [vmem:[#allocation2 + $0x18] sm:$0xff] %v299
          %308 = vst [vmem:[#allocation2 + $0x20] sm:$0xff] %v300
          %309 = vst [vmem:[#allocation2 + $0x28] sm:$0xff] %v301
          %310 = vst [vmem:[#allocation2 + $0x30] sm:$0xff] %v302
          %311 = vst [vmem:[#allocation2 + $0x38] sm:$0xff] %v303
        $region40: #{tpu_custom_call.1} parent=23 // pred_fallthru
          _
        // Predicated region
        $region41: #{tpu_custom_call.1} parent=23 // pred_check
          %p312 = pneg %p160
        $region42: #{tpu_custom_call.1} parent=23 // pred_check_branch
          %314 = sbr.rel (%p312) target = $region44
        $region43: #{tpu_custom_call.1} parent=23 // pred_region
          %v315 = vld [vmem:[#allocation2] sm:$0xff]
          %v316 = vld [vmem:[#allocation2 + $0x8] sm:$0xff]
          %v317 = vld [vmem:[#allocation2 + $0x10] sm:$0xff]
          %v318 = vld [vmem:[#allocation2 + $0x18] sm:$0xff]
          %v319 = vld [vmem:[#allocation2 + $0x20] sm:$0xff]
          %v320 = vld [vmem:[#allocation2 + $0x28] sm:$0xff]
          %v321 = vld [vmem:[#allocation2 + $0x30] sm:$0xff]
          %v322 = vld [vmem:[#allocation2 + $0x38] sm:$0xff]
          %v323 = vadd.f32 %v315, %v316
          %v324 = vadd.f32 %v323, %v317
          %v325 = vadd.f32 %v324, %v318
          %v326 = vadd.f32 %v325, %v319
          %v327 = vadd.f32 %v326, %v320
          %v328 = vadd.f32 %v327, %v321
          %v329 = vadd.f32 %v328, %v322
          %330 = vst [vmem:[%s155] sm:$0xff] %v329
        $region44: #{tpu_custom_call.1} parent=23 // pred_fallthru
          _
        %s331 = sand.u32 %s70, 1
        %s332 = scalar_lea.sflag [#allocation5], %s331
        %s333 = sand.u32 %s70, 1
        %s334 = smul.addr %s333, 8
        %s335 = scalar_lea.vmem [#allocation6], %s334
        // Predicated region
        $region45: #{tpu_custom_call.1} parent=23 // pred_check
          %p336 = pneg %p80
        $region46: #{tpu_custom_call.1} parent=23 // pred_check_branch
          %338 = sbr.rel (%p336) target = $region48
        $region47: #{tpu_custom_call.1} parent=23 // pred_region
          %s340 = ssub.s32 128, 128
          %341 = vsyncadd %s332, %s340
          %s342 = smul.addr %s22, 128
          %s343 = scalar_lea.hbm %s1, %s342
          %s345 = sshll.u32 %s335, 4
          %s346 = int_to_ptr.vmem [resolvable:$true] %s345
          %348 = dma.vmem_to_hbm [thread:$0]  %s346, 128, %s343, %s332
        $region48: #{tpu_custom_call.1} parent=23 // pred_fallthru
          _
      $region24: #{tpu_custom_call.1} parent=5 // pred_fallthru
        _
      %p349 = scmp.le.s32.totalorder 2, %s13
      // Predicated region
      $region49: #{tpu_custom_call.1} parent=5 // pred_check
        %p350 = pneg %p349
      $region50: #{tpu_custom_call.1} parent=5 // pred_check_branch
        %352 = sbr.rel (%p350) target = $region52
      $region51: #{tpu_custom_call.1} parent=5 // pred_region
        %s353 = ssub.s32 %s13, 2
        // Predicated region
        $region53: #{tpu_custom_call.1} parent=51 // pred_check
          %p354 = pneg %p86
        $region54: #{tpu_custom_call.1} parent=51 // pred_check_branch
          %356 = sbr.rel (%p354) target = $region56
        $region55: #{tpu_custom_call.1} parent=51 // pred_region
          %s357 = sand.u32 %s71, 1
          %s358 = scalar_lea.sflag [#allocation5], %s357
          %s359 = sand.u32 %s71, 1
          %s360 = smul.addr %s359, 8
          %s361 = scalar_lea.vmem [#allocation6], %s360
          %362 = dma.done %s358, 128
        $region56: #{tpu_custom_call.1} parent=51 // pred_fallthru
          _
      $region52: #{tpu_custom_call.1} parent=5 // pred_fallthru
        _
    $region6: #{tpu_custom_call.1} parent=1 // loop_footer
      %s17 = sadd.s32 1, %s13
    $region7: #{tpu_custom_call.1} parent=1 // loop_footer_branch
      %12 = sbr.rel target = $region3
    $region8: #{tpu_custom_call.1} parent=1 // loop_exit
      _
    %363 = vsyncpa [#allocation4], 1
    %s364 = scalar_lea.sflag [#allocation4], 1
    %365 = vsyncpa %s364, 1
    %366 = vsyncpa [#allocation5], 1
    %s367 = scalar_lea.sflag [#allocation5], 1
    %368 = vsyncpa %s367, 1

</llo_original>
